<compile_context>
chip_gen: v7x
topology: tpu7x:2x2x1
jax: 0.10.0
libtpu: 0.0.40
codegen_flags: <defaults>
</compile_context>

<pallas_src>
import functools

import jax
import jax.numpy as jnp
from jax.experimental import pallas as pl
from jax.experimental.pallas import tpu as pltpu


def _device_kind() -> str:
    try:
        return jax.devices()[0].device_kind.lower()
    except Exception:
        return ""


def _default_block_bytes(kind: str) -> int:
    # v5e: default scoped VMEM is 16 MiB -> keep ~4 MiB blocks (2x buffered).
    # v6e/v7x: ~8 MiB blocks amortize the ~0.35 us per-grid-step overhead
    # while 2x8 MiB stays well under the 32 MiB scoped default.
    if "v5" in kind:
        return 4 * 1024 * 1024
    if "v6" in kind or "v7" in kind:
        return 8 * 1024 * 1024
    return 4 * 1024 * 1024


def _max_pool_kernel(x_ref, o_ref, *, ts, seq_len, pad_val, needs_tail):
    # x_ref: (TB, TS, H), o_ref: (TB, H) -- resident across the seq grid axis.
    s = pl.program_id(1)
    x = x_ref[...]
    if needs_tail:
        # In-kernel tail masking: positions >= seq_len never win the max.
        pos = s * ts + jax.lax.broadcasted_iota(jnp.int32, (1, ts, 1), 1)
        x = jnp.where(pos < seq_len, x, pad_val)
    tile_max = jnp.max(x, axis=1)  # reduce seq (sublane) axis -> (TB, H)

    @pl.when(s == 0)
    def _():
        o_ref[...] = tile_max

    @pl.when(s != 0)
    def _():
        o_ref[...] = jnp.maximum(o_ref[...], tile_max)


def _masked_max_pool_kernel(x_ref, m_ref, o_ref, *, ts, seq_len, pad_val,
                            needs_tail):
    # x_ref: (TB, TS, H), m_ref: (TB, TS) (already cast to x dtype), o_ref: (TB, H)
    s = pl.program_id(1)
    x = x_ref[...]
    m = m_ref[...]                      # wrapper casts; no redundant astype here
    xm = x * m[:, :, None]              # multiply-then-max, as in the reference
    if needs_tail:
        pos = s * ts + jax.lax.broadcasted_iota(jnp.int32, (1, ts, 1), 1)
        xm = jnp.where(pos < seq_len, xm, pad_val)
    tile_max = jnp.max(xm, axis=1)

    @pl.when(s == 0)
    def _():
        o_ref[...] = tile_max

    @pl.when(s != 0)
    def _():
        o_ref[...] = jnp.maximum(o_ref[...], tile_max)


def _choose_tiles(B, S, H, itemsize, block_bytes, align, split_batch):
    """Pick (TB, TS).  TB is the full extent B or a multiple of `align`
    (dtype-aware sublane packing); TS is the full extent S or a multiple of
    128.  The product TB*TS*H*itemsize targets `block_bytes`."""
    row_bytes = H * itemsize
    tb_min = B if B <= align else align
    if tb_min * S * row_bytes <= block_bytes:
        # Whole sequence per block; grow the batch tile to fill the budget.
        ts = S
        cap = block_bytes // max(1, S * row_bytes)
        tb = B if cap >= B else max(align, (cap // align) * align)
    else:
        # Sequence too long for a minimal batch tile: tile the seq axis.
        tb = tb_min
        if S <= 128:
            ts = S  # full extent is legal; no padding for short sequences
        else:
            ts_cap = block_bytes // max(1, tb * row_bytes)
            ts = max(128, (ts_cap // 128) * 128)
            ts = min(ts, pl.cdiv(S, 128) * 128)
    if split_batch and B > align and pl.cdiv(B, tb) < 2:
        # v7x has 2 TensorCores: make sure the "parallel" batch axis has at
        # least 2 blocks so both cores get work.
        tb = max(align, (B // 2) // align * align)
    return tb, ts


def max_pooling_layer(input_batch: jax.Array,
                      attention_mask: jax.Array | None = None,
                      *,
                      block_bytes: int | None = None) -> jax.Array:
    """Pallas equivalent of MaxPoolingLayer.forward.

    Args:
      input_batch: (B, S, H) array.
      attention_mask: optional (B, S) array (multiplied into the input, as in
        the PyTorch reference -> masked positions contribute 0 to the max).
      block_bytes: soft per-block VMEM budget for the main input tile
        (defaults per device generation).
    Returns:
      (B, H) array = max over the sequence axis of the (optionally masked) input.
    """
    B, S, H = input_batch.shape
    dtype = input_batch.dtype
    itemsize = jnp.dtype(dtype).itemsize

    kind = _device_kind()
    if block_bytes is None:
        block_bytes = _default_block_bytes(kind)

    # Sublane packing: 8 rows/vreg for 32-bit, 16 for bf16, 32 for int8/fp8.
    align = max(8, 32 // itemsize)
    split_batch = "v7" in kind
    tb, ts = _choose_tiles(B, S, H, itemsize, block_bytes, align, split_batch)

    needs_tail = (S % ts) != 0
    if jnp.issubdtype(dtype, jnp.floating):
        pad_val = float("-inf")
    else:
        pad_val = int(jnp.iinfo(dtype).min)

    grid = (pl.cdiv(B, tb), pl.cdiv(S, ts))
    x_spec = pl.BlockSpec((tb, ts, H), lambda b, s: (b, s, 0))
    out_spec = pl.BlockSpec((tb, H), lambda b, s: (b, 0))  # resident over s
    out_shape = jax.ShapeDtypeStruct((B, H), dtype)

    has_mask = attention_mask is not None
    x_block = tb * ts * H * itemsize
    m_block = tb * ts * itemsize if has_mask else 0
    o_block = tb * H * itemsize
    need = 2 * (x_block + m_block) + 2 * o_block + (1 << 20)
    vmem_limit = int(min(56 << 20, max(32 << 20, need)))

    compiler_params = pltpu.CompilerParams(
        dimension_semantics=("parallel", "arbitrary"),
        vmem_limit_bytes=vmem_limit)

    x_bytes = B * S * H * itemsize
    o_bytes = B * H * itemsize

    if not has_mask:
        kernel = functools.partial(_max_pool_kernel, ts=ts, seq_len=S,
                                   pad_val=pad_val, needs_tail=needs_tail)
        cost = pl.CostEstimate(flops=B * S * H, transcendentals=0,
                               bytes_accessed=x_bytes + o_bytes)
        return pl.pallas_call(
            kernel,
            out_shape=out_shape,
            grid_spec=pltpu.PrefetchScalarGridSpec(
                num_scalar_prefetch=0,
                grid=grid,
                in_specs=[x_spec],
                out_specs=out_spec),
            compiler_params=compiler_params,
            cost_estimate=cost,
        )(input_batch)

    mask = attention_mask.astype(dtype)
    m_spec = pl.BlockSpec((tb, ts), lambda b, s: (b, s))
    kernel = functools.partial(_masked_max_pool_kernel, ts=ts, seq_len=S,
                               pad_val=pad_val, needs_tail=needs_tail)
    cost = pl.CostEstimate(flops=2 * B * S * H, transcendentals=0,
                           bytes_accessed=x_bytes + B * S * itemsize + o_bytes)
    return pl.pallas_call(
        kernel,
        out_shape=out_shape,
        grid_spec=pltpu.PrefetchScalarGridSpec(
            num_scalar_prefetch=0,
            grid=grid,
            in_specs=[x_spec, m_spec],
            out_specs=out_spec),
        compiler_params=compiler_params,
        cost_estimate=cost,
    )(input_batch, mask)


def _reference(input_batch, attention_mask=None):
    if attention_mask is not None:
        x = input_batch * attention_mask[..., None].astype(input_batch.dtype)
    else:
        x = input_batch
    return jnp.max(x, axis=-2)


if __name__ == "__main__":
    key = jax.random.PRNGKey(0)
    k1, k2, k3, k4, k5 = jax.random.split(key, 5)

    # Small shapes consistent with the module: (batch, seq, hidden).
    B, S, H = 2, 8, 32
    x = jax.random.normal(k1, (B, S, H), dtype=jnp.float32)
    mask = (jax.random.uniform(k2, (B, S)) > 0.3).astype(jnp.float32)
    mask = mask.at[:, 0].set(1.0)

    out_masked = jax.block_until_ready(max_pooling_layer(x, mask))
    assert out_masked.shape == (B, H)
    assert jnp.allclose(out_masked, _reference(x, mask), atol=1e-6, rtol=1e-6)

    out_plain = jax.block_until_ready(max_pooling_layer(x, None))
    assert jnp.allclose(out_plain, _reference(x, None), atol=1e-6, rtol=1e-6)

    # Exercise the tiled path with ragged batch (12 % 8) and ragged sequence
    # (200 % 128) tails -- no wrapper padding, in-kernel tail masking plus
    # edge-block batch handling -- by forcing a tiny per-block budget.
    B2, S2, H2 = 12, 200, 128
    x2 = jax.random.normal(k3, (B2, S2, H2), dtype=jnp.float32)
    mask2 = (jax.random.uniform(k4, (B2, S2)) > 0.5).astype(jnp.float32)
    mask2 = mask2.at[:, 0].set(1.0)
    small = 64 * 1024

    out2_m = jax.block_until_ready(max_pooling_layer(x2, mask2, block_bytes=small))
    assert out2_m.shape == (B2, H2)
    assert jnp.allclose(out2_m, _reference(x2, mask2), atol=1e-6, rtol=1e-6)

    out2_p = jax.block_until_ready(max_pooling_layer(x2, None, block_bytes=small))
    assert jnp.allclose(out2_p, _reference(x2, None), atol=1e-6, rtol=1e-6)

    # bf16 path (dtype-aware sublane alignment; 0/1 mask multiply and max are
    # exact in bf16 so the comparison is exact).
    B3, S3, H3 = 2, 8, 128
    x3 = jax.random.normal(k5, (B3, S3, H3), dtype=jnp.float32).astype(jnp.bfloat16)
    mask3 = (jax.random.uniform(k2, (B3, S3)) > 0.3).astype(jnp.bfloat16)
    mask3 = mask3.at[:, 0].set(1)
    out3 = jax.block_until_ready(max_pooling_layer(x3, mask3))
    assert jnp.array_equal(out3, _reference(x3, mask3))

    print("KERNEL_OK")
</pallas_src>

<mosaic_0001>
module attributes {stable_mosaic.version = 11 : i64} {
  func.func @_masked_max_pool_kernel(%arg0: i32, %arg1: i32, %arg2: memref<2x8x32xf32, #tpu.memory_space<vmem>>, %arg3: memref<2x8xf32, #tpu.memory_space<vmem>>, %arg4: memref<2x32xf32, #tpu.memory_space<vmem>>) attributes {dimension_semantics = [#tpu.dimension_semantics<parallel>, #tpu.dimension_semantics<arbitrary>], iteration_bounds = array<i64: 1, 1>, scalar_prefetch = 0 : i64, scratch_operands = 0 : i64, tpu.core_type = #tpu.core_type<tc>, window_params = [{transform_indices = @transform_0, window_bounds = array<i64: 2, 8, 32>}, {transform_indices = @transform_1, window_bounds = array<i64: 2, 8>}, {transform_indices = @transform_2, window_bounds = array<i64: 2, 32>}]} {
    %c0 = arith.constant 0 : index
    %c0_0 = arith.constant 0 : index
    %c0_1 = arith.constant 0 : index
    %0 = vector.load %arg2[%c0, %c0_0, %c0_1] : memref<2x8x32xf32, #tpu.memory_space<vmem>>, vector<2x8x32xf32>
    %c0_2 = arith.constant 0 : index
    %c0_3 = arith.constant 0 : index
    %1 = vector.load %arg3[%c0_2, %c0_3] : memref<2x8xf32, #tpu.memory_space<vmem>>, vector<2x8xf32>
    %2 = vector.shape_cast %1 : vector<2x8xf32> to vector<2x8x1xf32>
    %3 = vector.broadcast %2 : vector<2x8x1xf32> to vector<2x8x32xf32>
    %4 = arith.mulf %0, %3 : vector<2x8x32xf32>
    %cst = arith.constant dense<0xFF800000> : vector<2x32xf32>
    %5 = vector.multi_reduction <maximumf>, %4, %cst [1] : vector<2x8x32xf32> to vector<2x32xf32>
    %c0_i32 = arith.constant 0 : i32
    %6 = arith.cmpi eq, %arg1, %c0_i32 : i32
    %7 = arith.extui %6 : i1 to i32
    %c0_i32_4 = arith.constant 0 : i32
    %8 = arith.cmpi ne, %7, %c0_i32_4 : i32
    scf.if %8 {
      %c0_7 = arith.constant 0 : index
      %c0_8 = arith.constant 0 : index
      %12 = vector.load %arg4[%c0_7, %c0_8] : memref<2x32xf32, #tpu.memory_space<vmem>>, vector<2x32xf32>
      tpu.vector_store %arg4[%c0_7, %c0_8], %5 {strides = array<i32>} : memref<2x32xf32, #tpu.memory_space<vmem>>, vector<2x32xf32>,
    } else {
    }
    %c0_i32_5 = arith.constant 0 : i32
    %9 = arith.cmpi ne, %arg1, %c0_i32_5 : i32
    %10 = arith.extui %9 : i1 to i32
    %c0_i32_6 = arith.constant 0 : i32
    %11 = arith.cmpi ne, %10, %c0_i32_6 : i32
    scf.if %11 {
      %c0_7 = arith.constant 0 : index
      %c0_8 = arith.constant 0 : index
      %12 = vector.load %arg4[%c0_7, %c0_8] : memref<2x32xf32, #tpu.memory_space<vmem>>, vector<2x32xf32>
      %13 = arith.maximumf %12, %5 : vector<2x32xf32>
      %c0_9 = arith.constant 0 : index
      %c0_10 = arith.constant 0 : index
      %14 = vector.load %arg4[%c0_9, %c0_10] : memref<2x32xf32, #tpu.memory_space<vmem>>, vector<2x32xf32>
      tpu.vector_store %arg4[%c0_9, %c0_10], %13 {strides = array<i32>} : memref<2x32xf32, #tpu.memory_space<vmem>>, vector<2x32xf32>,
    } else {
    }
    return
  }
  func.func @transform_0(%arg0: i32, %arg1: i32) -> (i32, i32, i32) {
    %c0_i32 = arith.constant 0 : i32
    %c0_i32_0 = arith.constant 0 : i32
    return %arg0, %arg1, %c0_i32 : i32, i32, i32
  }
  func.func @transform_1(%arg0: i32, %arg1: i32) -> (i32, i32) {
    %c0_i32 = arith.constant 0 : i32
    return %arg0, %arg1 : i32, i32
  }
  func.func @transform_2(%arg0: i32, %arg1: i32) -> (i32, i32) {
    %c0_i32 = arith.constant 0 : i32
    %c0_i32_0 = arith.constant 0 : i32
    return %arg0, %c0_i32 : i32, i32
  }
}

</mosaic_0001>

<llo_original>
// kernel: tpu_custom_call.1
$region0: #{tpu_custom_call.1}
  #allocation0 [shape = 'u32[]', space=smem, size = 0x4, offset = 0x4, fixed_abs, tag = 'smem constant byte address 0x4 - core index']
  #allocation1 [shape = 'u32[144,128]{1,0:T(1,128)}', space=vmem, size = 0x12000, scoped, tag = 'internal scratch']
  %s0 = inlined_call_operand.hbm [shape: f32[2,8,32], index: 0, kind: input, shape index: {}]
  %s1 = inlined_call_operand.vmem [shape: f32[2,8], index: 1, kind: input, shape index: {}]
  %s2 = inlined_call_operand.hbm [shape: f32[2,32], index: 2, kind: output, shape index: {}]
  %s3 = sld [smem:[#allocation0]]
  $region30: #{tpu_custom_call.1} parent=0
    _
  %s5 = ssub.s32 1, %s3
  %s6 = scalar_select 0, %s5, %s3
  $region1: #{tpu_custom_call.1} parent=0
    #allocation2 [shape = 'u8[8192]{0}', space=vmem, size = 0x2000, scoped, tag = 'input window, operand 0, single buffered']
    #allocation3 [shape = 's32[1]{0}', space=sflag, size = 0x4, scoped, tag = 'scoped memory for tpu_custom_call.1']
    #allocation4 [shape = 's32[1]{0}', space=sflag, size = 0x4, scoped, tag = 'scoped memory for tpu_custom_call.1']
    #allocation5 [shape = 'u8[1024]{0}', space=vmem, size = 0x400, scoped, tag = 'output window, operand 0, single buffered']
    %7 = vsyncpa [#allocation3], 0
    %8 = vsyncpa [#allocation4], 0
    // Predicated region
    $region2: #{tpu_custom_call.1} parent=1 // pred_check
      _
    $region3: #{tpu_custom_call.1} parent=1 // pred_check_branch
      %10 = sbr.rel (0) target = $region5
    $region4: #{tpu_custom_call.1} parent=1 // pred_region
      %s12 = ssub.s32 256, 256
      %13 = vsyncadd [#allocation3], %s12
      %s14 = sshll.u32 [#allocation2], 4
      %s15 = int_to_ptr.vmem [resolvable:$true] %s14
      %20 = dma.hbm_to_vmem [thread:$0]  %s0, 256, %s15, [#allocation3], 128, 128, 8
    $region5: #{tpu_custom_call.1} parent=1 // pred_fallthru
      _
    // Predicated region
    $region6: #{tpu_custom_call.1} parent=1 // pred_check
      _
    $region7: #{tpu_custom_call.1} parent=1 // pred_check_branch
      %22 = sbr.rel (0) target = $region9
    $region8: #{tpu_custom_call.1} parent=1 // pred_region
      _
    $region9: #{tpu_custom_call.1} parent=1 // pred_fallthru
      _
    // Predicated region
    $region10: #{tpu_custom_call.1} parent=1 // pred_check
      _
    $region11: #{tpu_custom_call.1} parent=1 // pred_check_branch
      %24 = sbr.rel (0) target = $region13
    $region12: #{tpu_custom_call.1} parent=1 // pred_region
      %25 = dma.done [#allocation3], 256
    $region13: #{tpu_custom_call.1} parent=1 // pred_fallthru
      _
    %v26 = vld [vmem:[#allocation2] sm:$0xff]
    %v27 = vld [vmem:[#allocation2 + $0x8] sm:$0xff]
    %v28 = vld [vmem:[%s1] sm:$0x3]
    %v29 = vlaneseq
    %v30 = vshrl.u32 %v29, 7
    %v31 = vsub.s32 0, %v30
    %v32 = vrot.slane %v28, %v31
    %34 = vbcast.lane.b32.xlu0 %v32, 256
    %v35 = vpop.permute.xlu0 %34
    %v36 = vlaneseq
    %v37 = vshrl.u32 %v36, 7
    %v38 = vsub.s32 1, %v37
    %v39 = vrot.slane %v28, %v38
    %41 = vbcast.lane.b32.xlu0 %v39, 256
    %v42 = vpop.permute.xlu0 %41
    %v43 = vmul.f32 %v26, %v35
    %v44 = vmul.f32 %v27, %v42
    %vm45 = vcmask 261120
    %v46 = vsel %vm45, %v43, -inf
    %v47 = vrot.slane %v46, 4
    %v48 = vmax.f32 %v46, %v47
    %v49 = vrot.slane %v48, 2
    %v50 = vmax.f32 %v48, %v49
    %v51 = vrot.slane %v50, 1
    %v52 = vmax.f32 %v50, %v51
    %v53 = vsel %vm45, %v44, -inf
    %v54 = vrot.slane %v53, 4
    %v55 = vmax.f32 %v53, %v54
    %v56 = vrot.slane %v55, 2
    %v57 = vmax.f32 %v55, %v56
    %v58 = vrot.slane %v57, 1
    %v59 = vmax.f32 %v57, %v58
    %p60 = scmp.eq.s32.totalorder 0, 0
    // Predicated region
    $region14: #{tpu_custom_call.1} parent=1 // pred_check
      %p61 = pneg %p60
    $region15: #{tpu_custom_call.1} parent=1 // pred_check_branch
      %63 = sbr.rel (%p61) target = $region17
    $region16: #{tpu_custom_call.1} parent=1 // pred_region
      %vm66 = vcmask 1041409
      %v67 = vsel %vm66, %v59, %v52
      %vm69 = vcmask 254976
      %70 = vst.msk [vmem:[#allocation5] sm:$0x3] %vm69, %v67
    $region17: #{tpu_custom_call.1} parent=1 // pred_fallthru
      _
    %p71 = scmp.ne.s32.totalorder 0, 0
    // Predicated region
    $region18: #{tpu_custom_call.1} parent=1 // pred_check
      %p72 = pneg %p71
    $region19: #{tpu_custom_call.1} parent=1 // pred_check_branch
      %74 = sbr.rel (%p72) target = $region21
    $region20: #{tpu_custom_call.1} parent=1 // pred_region
      %v75 = vld [vmem:[#allocation5] sm:$0x3]
      %vm78 = vcmask 1041409
      %v79 = vsel %vm78, %v59, %v52
      %v81 = vmax.f32 %v75, %v79
      %vm82 = vcmask 254976
      %83 = vst.msk [vmem:[#allocation5] sm:$0x3] %vm82, %v81
    $region21: #{tpu_custom_call.1} parent=1 // pred_fallthru
      _
    // Predicated region
    $region22: #{tpu_custom_call.1} parent=1 // pred_check
      _
    $region23: #{tpu_custom_call.1} parent=1 // pred_check_branch
      %85 = sbr.rel (0) target = $region25
    $region24: #{tpu_custom_call.1} parent=1 // pred_region
      %s87 = ssub.s32 32, 32
      %88 = vsyncadd [#allocation4], %s87
      %s90 = sshll.u32 [#allocation5], 4
      %s91 = int_to_ptr.vmem [resolvable:$true] %s90
      %93 = dma.vmem_to_hbm [thread:$0]  %s91, 32, %s2, [#allocation4]
    $region25: #{tpu_custom_call.1} parent=1 // pred_fallthru
      _
    // Predicated region
    $region26: #{tpu_custom_call.1} parent=1 // pred_check
      _
    $region27: #{tpu_custom_call.1} parent=1 // pred_check_branch
      %95 = sbr.rel (0) target = $region29
    $region28: #{tpu_custom_call.1} parent=1 // pred_region
      %96 = dma.done [#allocation4], 32
    $region29: #{tpu_custom_call.1} parent=1 // pred_fallthru
      _
    %97 = vsyncpa [#allocation3], 1
    %98 = vsyncpa [#allocation4], 1

</llo_original>
